<compile_context>
chip_gen: v5e
topology: v5e:2x2
jax: 0.10.0
libtpu: 0.0.40
codegen_flags: <defaults>
</compile_context>

<pallas_src>
import functools

import jax
import jax.numpy as jnp
from jax.experimental import pallas as pl
from jax.experimental.pallas import tpu as pltpu


def _round_up(n, m):
    return ((n + m - 1) // m) * m


def _mlp_kernel(x_ref, w1_ref, w234_ref, b14_ref, w5_ref, b5_ref, o_ref,
                *, compute_dtype):
    """Whole 5-layer MLP for one batch tile, fully resident in VMEM.

    x_ref   : (tb, D)      f32
    w1_ref  : (D, H)       compute_dtype
    w234_ref: (3, H, H)    compute_dtype   (fc2, fc3, fc4)
    b14_ref : (4, H)       f32             (b1..b4)
    w5_ref  : (1, H)       f32             (fc5 weight as a row)
    b5_ref  : (1, 1)       f32
    o_ref   : (1, 1, tb)   f32             (lane-dense output row)
    """
    cd = compute_dtype
    b_all = b14_ref[...]                                   # (4, H) f32, loaded once

    # fc1 : MXU matmul (bf16 operands, f32 accumulate) + bias + ReLU on VPU (f32).
    h = jnp.dot(x_ref[...].astype(cd), w1_ref[...],
                preferred_element_type=jnp.float32)
    h = jnp.maximum(h + b_all[0:1, :], 0.0)

    # fc2 .. fc4 (statically unrolled).
    for layer in range(3):
        h = jnp.dot(h.astype(cd), w234_ref[layer],
                    preferred_element_type=jnp.float32)
        h = jnp.maximum(h + b_all[layer + 1:layer + 2, :], 0.0)

    # fc5 : output dim is 1 -> VPU multiply + lane reduction (MXU stays on fc1-fc4),
    # written as a lane-dense (1, 1, tb) row instead of a (tb, 1) column.
    q = jnp.sum(h * w5_ref[...], axis=-1)                  # (tb,) f32
    q = q.reshape(1, 1, -1) + b5_ref[0, 0]
    o_ref[...] = q.astype(o_ref.dtype)


@functools.partial(jax.jit, static_argnames=("tb", "compute_dtype"))
def centralized_q_forward(x, params, tb=512, compute_dtype=jnp.bfloat16):
    """x: [B, input_dim] float32.  params: w_i stored as [in, out] (PyTorch
    nn.Linear weight transposed), b_i as [1, out].  Returns [B, 1] float32."""
    B, D = x.shape
    H = params["w1"].shape[1]

    # Lane-dense batch tile (>=128); pad ragged batches with zeros.
    tb_eff = max(128, min(int(tb), _round_up(B, 128)))
    Bp = _round_up(B, tb_eff)
    num_tiles = Bp // tb_eff
    x_pad = jnp.pad(x, ((0, Bp - B), (0, 0))) if Bp != B else x

    cd = compute_dtype
    w1 = params["w1"].astype(cd)
    w234 = jnp.stack([params["w2"], params["w3"], params["w4"]], axis=0).astype(cd)
    b14 = jnp.concatenate(
        [params["b1"], params["b2"], params["b3"], params["b4"]], axis=0
    ).astype(jnp.float32)
    w5_row = params["w5"].reshape(1, H).astype(jnp.float32)
    b5 = params["b5"].reshape(1, 1).astype(jnp.float32)

    kernel = functools.partial(_mlp_kernel, compute_dtype=cd)

    out_tiles = pl.pallas_call(
        kernel,
        out_shape=jax.ShapeDtypeStruct((num_tiles, 1, tb_eff), jnp.float32),
        grid=(num_tiles,),
        in_specs=[
            pl.BlockSpec((tb_eff, D), lambda i: (i, 0)),       # x tile (streamed)
            pl.BlockSpec((D, H), lambda i: (0, 0)),            # fc1 weight
            pl.BlockSpec((3, H, H), lambda i: (0, 0, 0)),      # fc2..fc4 weights
            pl.BlockSpec((4, H), lambda i: (0, 0)),            # b1..b4
            pl.BlockSpec((1, H), lambda i: (0, 0)),            # fc5 weight row
            pl.BlockSpec((1, 1), lambda i: (0, 0)),            # fc5 bias
        ],
        out_specs=pl.BlockSpec((1, 1, tb_eff), lambda i: (i, 0, 0)),
        compiler_params=pltpu.CompilerParams(
            dimension_semantics=("parallel",)),
    )(x_pad, w1, w234, b14, w5_row, b5)

    # Undo the lane-dense tiling / batch padding: (num_tiles, 1, tb) -> (B, 1).
    return out_tiles.reshape(-1)[:B].reshape(B, 1)


def init_params(key, input_dim, hidden_dim=64):
    """Synthetic init matching the module's shapes.  fanin_init and PyTorch's
    default Linear init are both U(-1/sqrt(fan_in), 1/sqrt(fan_in))."""
    ks = jax.random.split(key, 10)

    def fanin_uniform(k, fan_in, shape):
        bound = 1.0 / jnp.sqrt(jnp.float32(fan_in))
        return jax.random.uniform(k, shape, jnp.float32, -bound, bound)

    D, H = input_dim, hidden_dim
    return {
        # stored as [in, out] == PyTorch weight.T
        "w1": fanin_uniform(ks[0], D, (D, H)), "b1": fanin_uniform(ks[1], D, (1, H)),
        "w2": fanin_uniform(ks[2], H, (H, H)), "b2": fanin_uniform(ks[3], H, (1, H)),
        "w3": fanin_uniform(ks[4], H, (H, H)), "b3": fanin_uniform(ks[5], H, (1, H)),
        "w4": fanin_uniform(ks[6], H, (H, H)), "b4": fanin_uniform(ks[7], H, (1, H)),
        "w5": fanin_uniform(ks[8], H, (H, 1)), "b5": fanin_uniform(ks[9], H, (1, 1)),
    }


def reference_forward(x, params):
    h = jnp.maximum(x @ params["w1"] + params["b1"], 0.0)
    h = jnp.maximum(h @ params["w2"] + params["b2"], 0.0)
    h = jnp.maximum(h @ params["w3"] + params["b3"], 0.0)
    h = jnp.maximum(h @ params["w4"] + params["b4"], 0.0)
    return h @ params["w5"] + params["b5"]


if __name__ == "__main__":
    # Small shapes consistent with the module: input_dim = max(obs+act)*2 -> 32,
    # hidden_dim = 64, output dim = 1.
    BATCH = 8
    INPUT_DIM = 32
    HIDDEN_DIM = 64

    key = jax.random.PRNGKey(0)
    k_x, k_p = jax.random.split(key)
    x = jax.random.normal(k_x, (BATCH, INPUT_DIM), dtype=jnp.float32)
    params = init_params(k_p, INPUT_DIM, HIDDEN_DIM)

    ref = reference_forward(x, params)

    # Exact-semantics check: f32 MXU path vs. pure-JAX f32 reference.
    out_f32 = jax.block_until_ready(
        centralized_q_forward(x, params, compute_dtype=jnp.float32))
    assert out_f32.shape == (BATCH, 1)
    assert jnp.allclose(out_f32, ref, atol=1e-4, rtol=1e-4), "f32 kernel mismatch"

    # Fast path (default): bf16 MXU operands, f32 accumulation -> loose tolerance.
    out_bf16 = jax.block_until_ready(centralized_q_forward(x, params))
    assert out_bf16.shape == (BATCH, 1)
    assert jnp.allclose(out_bf16, ref, atol=5e-2, rtol=5e-2), "bf16 kernel mismatch"

    print("KERNEL_OK")
</pallas_src>

<mosaic_0001>
module attributes {stable_mosaic.version = 11 : i64} {
  func.func @_mlp_kernel(%arg0: i32, %arg1: memref<128x32xf32, #tpu.memory_space<vmem>>, %arg2: memref<32x64xf32, #tpu.memory_space<vmem>>, %arg3: memref<3x64x64xf32, #tpu.memory_space<vmem>>, %arg4: memref<4x64xf32, #tpu.memory_space<vmem>>, %arg5: memref<1x64xf32, #tpu.memory_space<vmem>>, %arg6: memref<1x1xf32, #tpu.memory_space<vmem>>, %arg7: memref<1x1x128xf32, #tpu.memory_space<vmem>>) attributes {dimension_semantics = [#tpu.dimension_semantics<parallel>], iteration_bounds = array<i64: 1>, scalar_prefetch = 0 : i64, scratch_operands = 0 : i64, tpu.core_type = #tpu.core_type<tc>, window_params = [{transform_indices = @transform_0, window_bounds = array<i64: 128, 32>}, {pipeline_mode = #tpu.pipeline_mode<synchronous>, transform_indices = @transform_1, window_bounds = array<i64: 32, 64>}, {pipeline_mode = #tpu.pipeline_mode<synchronous>, transform_indices = @transform_2, window_bounds = array<i64: 3, 64, 64>}, {pipeline_mode = #tpu.pipeline_mode<synchronous>, transform_indices = @transform_3, window_bounds = array<i64: 4, 64>}, {pipeline_mode = #tpu.pipeline_mode<synchronous>, transform_indices = @transform_4, window_bounds = array<i64: 1, 64>}, {pipeline_mode = #tpu.pipeline_mode<synchronous>, transform_indices = @transform_5, window_bounds = array<i64: 1, 1>}, {transform_indices = @transform_6, window_bounds = array<i64: 1, 1, 128>}]} {
    %c0 = arith.constant 0 : index
    %c0_0 = arith.constant 0 : index
    %0 = vector.load %arg4[%c0, %c0_0] : memref<4x64xf32, #tpu.memory_space<vmem>>, vector<4x64xf32>
    %c0_1 = arith.constant 0 : index
    %c0_2 = arith.constant 0 : index
    %1 = vector.load %arg1[%c0_1, %c0_2] : memref<128x32xf32, #tpu.memory_space<vmem>>, vector<128x32xf32>
    %c0_3 = arith.constant 0 : index
    %c0_4 = arith.constant 0 : index
    %2 = vector.load %arg2[%c0_3, %c0_4] : memref<32x64xf32, #tpu.memory_space<vmem>>, vector<32x64xf32>
    %cst = arith.constant dense<0.000000e+00> : vector<128x64xf32>
    %3 = tpu.matmul %1, %2, %cst {dimension_numbers = #tpu.dot_dimension_numbers<[1], [0], [0], [1], [0, 0, 1, 1], [], []>} : vector<128x32xf32>, vector<32x64xf32>, vector<128x64xf32> -> vector<128x64xf32>
    %4 = vector.extract_strided_slice %0 {offsets = [0, 0], sizes = [1, 64], strides = [1, 1]} : vector<4x64xf32> to vector<1x64xf32>
    %5 = vector.broadcast %4 : vector<1x64xf32> to vector<128x64xf32>
    %6 = arith.addf %3, %5 : vector<128x64xf32>
    %cst_5 = arith.constant 0.000000e+00 : f32
    %7 = vector.broadcast %cst_5 : f32 to vector<128x64xf32>
    %8 = arith.maximumf %6, %7 : vector<128x64xf32>
    %c0_6 = arith.constant 0 : index
    %c0_7 = arith.constant 0 : index
    %c0_8 = arith.constant 0 : index
    %9 = vector.load %arg3[%c0_6, %c0_7, %c0_8] : memref<3x64x64xf32, #tpu.memory_space<vmem>>, vector<1x64x64xf32>
    %10 = vector.shape_cast %9 : vector<1x64x64xf32> to vector<64x64xf32>
    %cst_9 = arith.constant dense<0.000000e+00> : vector<128x64xf32>
    %11 = tpu.matmul %8, %10, %cst_9 {dimension_numbers = #tpu.dot_dimension_numbers<[1], [0], [0], [1], [0, 0, 1, 1], [], []>} : vector<128x64xf32>, vector<64x64xf32>, vector<128x64xf32> -> vector<128x64xf32>
    %12 = vector.extract_strided_slice %0 {offsets = [1, 0], sizes = [1, 64], strides = [1, 1]} : vector<4x64xf32> to vector<1x64xf32>
    %13 = vector.broadcast %12 : vector<1x64xf32> to vector<128x64xf32>
    %14 = arith.addf %11, %13 : vector<128x64xf32>
    %cst_10 = arith.constant 0.000000e+00 : f32
    %15 = vector.broadcast %cst_10 : f32 to vector<128x64xf32>
    %16 = arith.maximumf %14, %15 : vector<128x64xf32>
    %c1 = arith.constant 1 : index
    %c0_11 = arith.constant 0 : index
    %c0_12 = arith.constant 0 : index
    %17 = vector.load %arg3[%c1, %c0_11, %c0_12] : memref<3x64x64xf32, #tpu.memory_space<vmem>>, vector<1x64x64xf32>
    %18 = vector.shape_cast %17 : vector<1x64x64xf32> to vector<64x64xf32>
    %cst_13 = arith.constant dense<0.000000e+00> : vector<128x64xf32>
    %19 = tpu.matmul %16, %18, %cst_13 {dimension_numbers = #tpu.dot_dimension_numbers<[1], [0], [0], [1], [0, 0, 1, 1], [], []>} : vector<128x64xf32>, vector<64x64xf32>, vector<128x64xf32> -> vector<128x64xf32>
    %20 = vector.extract_strided_slice %0 {offsets = [2, 0], sizes = [1, 64], strides = [1, 1]} : vector<4x64xf32> to vector<1x64xf32>
    %21 = vector.broadcast %20 : vector<1x64xf32> to vector<128x64xf32>
    %22 = arith.addf %19, %21 : vector<128x64xf32>
    %cst_14 = arith.constant 0.000000e+00 : f32
    %23 = vector.broadcast %cst_14 : f32 to vector<128x64xf32>
    %24 = arith.maximumf %22, %23 : vector<128x64xf32>
    %c2 = arith.constant 2 : index
    %c0_15 = arith.constant 0 : index
    %c0_16 = arith.constant 0 : index
    %25 = vector.load %arg3[%c2, %c0_15, %c0_16] : memref<3x64x64xf32, #tpu.memory_space<vmem>>, vector<1x64x64xf32>
    %26 = vector.shape_cast %25 : vector<1x64x64xf32> to vector<64x64xf32>
    %cst_17 = arith.constant dense<0.000000e+00> : vector<128x64xf32>
    %27 = tpu.matmul %24, %26, %cst_17 {dimension_numbers = #tpu.dot_dimension_numbers<[1], [0], [0], [1], [0, 0, 1, 1], [], []>} : vector<128x64xf32>, vector<64x64xf32>, vector<128x64xf32> -> vector<128x64xf32>
    %28 = vector.extract_strided_slice %0 {offsets = [3, 0], sizes = [1, 64], strides = [1, 1]} : vector<4x64xf32> to vector<1x64xf32>
    %29 = vector.broadcast %28 : vector<1x64xf32> to vector<128x64xf32>
    %30 = arith.addf %27, %29 : vector<128x64xf32>
    %cst_18 = arith.constant 0.000000e+00 : f32
    %31 = vector.broadcast %cst_18 : f32 to vector<128x64xf32>
    %32 = arith.maximumf %30, %31 : vector<128x64xf32>
    %c0_19 = arith.constant 0 : index
    %c0_20 = arith.constant 0 : index
    %33 = vector.load %arg5[%c0_19, %c0_20] : memref<1x64xf32, #tpu.memory_space<vmem>>, vector<1x64xf32>
    %34 = vector.broadcast %33 : vector<1x64xf32> to vector<128x64xf32>
    %35 = arith.mulf %32, %34 : vector<128x64xf32>
    %cst_21 = arith.constant dense<0.000000e+00> : vector<128xf32>
    %36 = vector.multi_reduction <add>, %35, %cst_21 [1] : vector<128x64xf32> to vector<128xf32>
    %37 = vector.shape_cast %36 : vector<128xf32> to vector<1x1x128xf32>
    %c0_22 = arith.constant 0 : index
    %c0_23 = arith.constant 0 : index
    %38 = vector.load %arg6[%c0_22, %c0_23] : memref<1x1xf32, #tpu.memory_space<vmem>>, vector<1x1xf32>
    %39 = vector.extract %38[0, 0] : f32 from vector<1x1xf32>
    %40 = vector.broadcast %39 : f32 to vector<1x1x128xf32>
    %41 = arith.addf %37, %40 : vector<1x1x128xf32>
    %c0_24 = arith.constant 0 : index
    %c0_25 = arith.constant 0 : index
    %c0_26 = arith.constant 0 : index
    %42 = vector.load %arg7[%c0_24, %c0_25, %c0_26] : memref<1x1x128xf32, #tpu.memory_space<vmem>>, vector<1x1x128xf32>
    tpu.vector_store %arg7[%c0_24, %c0_25, %c0_26], %41 {strides = array<i32>} : memref<1x1x128xf32, #tpu.memory_space<vmem>>, vector<1x1x128xf32>,
    return
  }
  func.func @transform_0(%arg0: i32) -> (i32, i32) {
    %c0_i32 = arith.constant 0 : i32
    %c0_i32_0 = arith.constant 0 : i32
    return %arg0, %c0_i32 : i32, i32
  }
  func.func @transform_1(%arg0: i32) -> (i32, i32) {
    %c0_i32 = arith.constant 0 : i32
    %c0_i32_0 = arith.constant 0 : i32
    %c0_i32_1 = arith.constant 0 : i32
    return %c0_i32, %c0_i32_0 : i32, i32
  }
  func.func @transform_2(%arg0: i32) -> (i32, i32, i32) {
    %c0_i32 = arith.constant 0 : i32
    %c0_i32_0 = arith.constant 0 : i32
    %c0_i32_1 = arith.constant 0 : i32
    %c0_i32_2 = arith.constant 0 : i32
    return %c0_i32, %c0_i32_0, %c0_i32_1 : i32, i32, i32
  }
  func.func @transform_3(%arg0: i32) -> (i32, i32) {
    %c0_i32 = arith.constant 0 : i32
    %c0_i32_0 = arith.constant 0 : i32
    %c0_i32_1 = arith.constant 0 : i32
    return %c0_i32, %c0_i32_0 : i32, i32
  }
  func.func @transform_4(%arg0: i32) -> (i32, i32) {
    %c0_i32 = arith.constant 0 : i32
    %c0_i32_0 = arith.constant 0 : i32
    %c0_i32_1 = arith.constant 0 : i32
    return %c0_i32, %c0_i32_0 : i32, i32
  }
  func.func @transform_5(%arg0: i32) -> (i32, i32) {
    %c0_i32 = arith.constant 0 : i32
    %c0_i32_0 = arith.constant 0 : i32
    %c0_i32_1 = arith.constant 0 : i32
    return %c0_i32, %c0_i32_0 : i32, i32
  }
  func.func @transform_6(%arg0: i32) -> (i32, i32, i32) {
    %c0_i32 = arith.constant 0 : i32
    %c0_i32_0 = arith.constant 0 : i32
    %c0_i32_1 = arith.constant 0 : i32
    return %arg0, %c0_i32, %c0_i32_0 : i32, i32, i32
  }
}

</mosaic_0001>

<llo_original>
// kernel: centralized_q_forward.1
$region0: #{centralized_q_forward.1}
  #allocation0 [shape = 'u32[]', space=smem, size = 0x4, offset = 0x4, fixed_abs, tag = 'smem constant byte address 0x4 - core index']
  #allocation1 [shape = 'u32[72,128]{1,0:T(1,128)}', space=vmem, size = 0x9000, scoped, tag = 'internal scratch']
  #allocation2 [shape = 'f32[1,1]{1,0:T(1,128)S(1)}', space=vmem, size = 0x200, scoped, tag = 'scoped memory for centralized_q_forward.1']
  %s0 = inlined_call_operand.vmem [shape: f32[128,32], index: 0, kind: input, shape index: {}]
  %s1 = inlined_call_operand.vmem [shape: f32[32,64], index: 1, kind: input, shape index: {}]
  %s2 = inlined_call_operand.vmem [shape: f32[3,64,64], index: 2, kind: input, shape index: {}]
  %s3 = inlined_call_operand.vmem [shape: f32[4,64], index: 3, kind: input, shape index: {}]
  %s4 = inlined_call_operand.vmem [shape: f32[1,64], index: 4, kind: input, shape index: {}]
  %s5 = inlined_call_operand.<no memory space> [shape: f32[1,1], index: 5, kind: input, shape index: {}]
  %s6 = inlined_call_operand.vmem [shape: f32[1,1,128], index: 6, kind: output, shape index: {}]
  %s7 = sld [smem:[#allocation0]]
  $region34: #{centralized_q_forward.1} parent=0
    _
  %s9 = ssub.s32 1, %s7
  %s10 = scalar_select 0, %s9, %s7
  %v11 = vstv %s5
  %12 = vst [vmem:[#allocation2] sm:$0x1] %v11
  // Predicated region
  $region2: #{centralized_q_forward.1} parent=0 // pred_check
    _
  $region3: #{centralized_q_forward.1} parent=0 // pred_check_branch
    %14 = sbr.rel (0) target = $region5
  $region4: #{centralized_q_forward.1} parent=0 // pred_region
    _
  $region5: #{centralized_q_forward.1} parent=0 // pred_fallthru
    _
  // Predicated region
  $region6: #{centralized_q_forward.1} parent=0 // pred_check
    _
  $region7: #{centralized_q_forward.1} parent=0 // pred_check_branch
    %16 = sbr.rel (0) target = $region9
  $region8: #{centralized_q_forward.1} parent=0 // pred_region
    _
  $region9: #{centralized_q_forward.1} parent=0 // pred_fallthru
    _
  // Predicated region
  $region10: #{centralized_q_forward.1} parent=0 // pred_check
    _
  $region11: #{centralized_q_forward.1} parent=0 // pred_check_branch
    %18 = sbr.rel (0) target = $region13
  $region12: #{centralized_q_forward.1} parent=0 // pred_region
    _
  $region13: #{centralized_q_forward.1} parent=0 // pred_fallthru
    _
  // Predicated region
  $region14: #{centralized_q_forward.1} parent=0 // pred_check
    _
  $region15: #{centralized_q_forward.1} parent=0 // pred_check_branch
    %20 = sbr.rel (0) target = $region17
  $region16: #{centralized_q_forward.1} parent=0 // pred_region
    _
  $region17: #{centralized_q_forward.1} parent=0 // pred_fallthru
    _
  // Predicated region
  $region18: #{centralized_q_forward.1} parent=0 // pred_check
    _
  $region19: #{centralized_q_forward.1} parent=0 // pred_check_branch
    %22 = sbr.rel (0) target = $region21
  $region20: #{centralized_q_forward.1} parent=0 // pred_region
    _
  $region21: #{centralized_q_forward.1} parent=0 // pred_fallthru
    _
  // Predicated region
  $region22: #{centralized_q_forward.1} parent=0 // pred_check
    _
  $region23: #{centralized_q_forward.1} parent=0 // pred_check_branch
    %24 = sbr.rel (0) target = $region25
  $region24: #{centralized_q_forward.1} parent=0 // pred_region
    _
  $region25: #{centralized_q_forward.1} parent=0 // pred_fallthru
    _
  %v25 = vld [vmem:[%s3] sm:$0xf]
  %v26 = vld [vmem:[%s0] sm:$0xff]
  %v27 = vld [vmem:[%s0 + $0x8] sm:$0xff]
  %v28 = vld [vmem:[%s0 + $0x10] sm:$0xff]
  %v29 = vld [vmem:[%s0 + $0x18] sm:$0xff]
  %v30 = vld [vmem:[%s0 + $0x20] sm:$0xff]
  %v31 = vld [vmem:[%s0 + $0x28] sm:$0xff]
  %v32 = vld [vmem:[%s0 + $0x30] sm:$0xff]
  %v33 = vld [vmem:[%s0 + $0x38] sm:$0xff]
  %v34 = vld [vmem:[%s0 + $0x40] sm:$0xff]
  %v35 = vld [vmem:[%s0 + $0x48] sm:$0xff]
  %v36 = vld [vmem:[%s0 + $0x50] sm:$0xff]
  %v37 = vld [vmem:[%s0 + $0x58] sm:$0xff]
  %v38 = vld [vmem:[%s0 + $0x60] sm:$0xff]
  %v39 = vld [vmem:[%s0 + $0x68] sm:$0xff]
  %v40 = vld [vmem:[%s0 + $0x70] sm:$0xff]
  %v41 = vld [vmem:[%s0 + $0x78] sm:$0xff]
  %v42 = vld [vmem:[%s1] sm:$0xff]
  %v43 = vld [vmem:[%s1 + $0x8] sm:$0xff]
  %v44 = vld [vmem:[%s1 + $0x10] sm:$0xff]
  %v45 = vld [vmem:[%s1 + $0x18] sm:$0xff]
  %v46 = vperm.slane %v25, 0
  %vm47 = vcmask 261120
  %v49 = vsel %vm47, %v26, 0
  %v52 = vsel %vm47, %v27, 0
  %v55 = vsel %vm47, %v28, 0
  %v58 = vsel %vm47, %v29, 0
  %v61 = vsel %vm47, %v30, 0
  %v64 = vsel %vm47, %v31, 0
  %v67 = vsel %vm47, %v32, 0
  %v70 = vsel %vm47, %v33, 0
  %v73 = vsel %vm47, %v34, 0
  %v76 = vsel %vm47, %v35, 0
  %v79 = vsel %vm47, %v36, 0
  %v82 = vsel %vm47, %v37, 0
  %v85 = vsel %vm47, %v38, 0
  %v88 = vsel %vm47, %v39, 0
  %v91 = vsel %vm47, %v40, 0
  %v94 = vsel %vm47, %v41, 0
  %96 = vmatpush.msra.mxu0 0.0
  %97 = vmatpush.msra.mxu0 0.0
  %98 = vmatpush.msra.mxu0 0.0
  %99 = vmatpush.msra.mxu0 0.0
  %100 = vmatpush.msra.mxu0 0.0
  %101 = vmatpush.msra.mxu0 0.0
  %102 = vmatpush.msra.mxu0 0.0
  %103 = vmatpush.msra.mxu0 0.0
  %104 = vmatpush.msra.mxu0 0.0
  %105 = vmatpush.msra.mxu0 0.0
  %106 = vmatpush.msra.mxu0 0.0
  %107 = vmatpush.msra.mxu0 0.0
  %108 = vmatpush.msra.mxu0 %v45
  %109 = vmatpush.msra.mxu0 %v44
  %110 = vmatpush.msra.mxu0 %v43
  %111 = vmatpush.msra.mxu0 %v42
  %112 = vmatmul.f32.gmra.mxu0 %v49
  %v113 = vpop.f32.mrf.mxu0
  %v114 = vadd.f32 %v46, %v113
  %115 = vmatmul.f32.gmra.mxu0 %v52
  %v116 = vpop.f32.mrf.mxu0
  %v117 = vadd.f32 %v46, %v116
  %118 = vmatmul.f32.gmra.mxu0 %v55
  %v119 = vpop.f32.mrf.mxu0
  %v120 = vadd.f32 %v46, %v119
  %121 = vmatmul.f32.gmra.mxu0 %v58
  %v122 = vpop.f32.mrf.mxu0
  %v123 = vadd.f32 %v46, %v122
  %124 = vmatmul.f32.gmra.mxu0 %v61
  %v125 = vpop.f32.mrf.mxu0
  %v126 = vadd.f32 %v46, %v125
  %127 = vmatmul.f32.gmra.mxu0 %v64
  %v128 = vpop.f32.mrf.mxu0
  %v129 = vadd.f32 %v46, %v128
  %130 = vmatmul.f32.gmra.mxu0 %v67
  %v131 = vpop.f32.mrf.mxu0
  %v132 = vadd.f32 %v46, %v131
  %133 = vmatmul.f32.gmra.mxu0 %v70
  %v134 = vpop.f32.mrf.mxu0
  %v135 = vadd.f32 %v46, %v134
  %136 = vmatmul.f32.gmra.mxu0 %v73
  %v137 = vpop.f32.mrf.mxu0
  %v138 = vadd.f32 %v46, %v137
  %139 = vmatmul.f32.gmra.mxu0 %v76
  %v140 = vpop.f32.mrf.mxu0
  %v141 = vadd.f32 %v46, %v140
  %142 = vmatmul.f32.gmra.mxu0 %v79
  %v143 = vpop.f32.mrf.mxu0
  %v144 = vadd.f32 %v46, %v143
  %145 = vmatmul.f32.gmra.mxu0 %v82
  %v146 = vpop.f32.mrf.mxu0
  %v147 = vadd.f32 %v46, %v146
  %148 = vmatmul.f32.gmra.mxu0 %v85
  %v149 = vpop.f32.mrf.mxu0
  %v150 = vadd.f32 %v46, %v149
  %151 = vmatmul.f32.gmra.mxu0 %v88
  %v152 = vpop.f32.mrf.mxu0
  %v153 = vadd.f32 %v46, %v152
  %154 = vmatmul.f32.gmra.mxu0 %v91
  %v155 = vpop.f32.mrf.mxu0
  %v156 = vadd.f32 %v46, %v155
  %157 = vmatmul.f32.gmra.mxu0 %v94
  %v158 = vpop.f32.mrf.mxu0
  %v159 = vadd.f32 %v46, %v158
  %160 = vdwg.mxu0
  %v161 = vmax.f32 %v114, 0.0
  %v162 = vmax.f32 %v117, 0.0
  %v163 = vmax.f32 %v120, 0.0
  %v164 = vmax.f32 %v123, 0.0
  %v165 = vmax.f32 %v126, 0.0
  %v166 = vmax.f32 %v129, 0.0
  %v167 = vmax.f32 %v132, 0.0
  %v168 = vmax.f32 %v135, 0.0
  %v169 = vmax.f32 %v138, 0.0
  %v170 = vmax.f32 %v141, 0.0
  %v171 = vmax.f32 %v144, 0.0
  %v172 = vmax.f32 %v147, 0.0
  %v173 = vmax.f32 %v150, 0.0
  %v174 = vmax.f32 %v153, 0.0
  %v175 = vmax.f32 %v156, 0.0
  %v176 = vmax.f32 %v159, 0.0
  %v177 = vld [vmem:[%s2] sm:$0xff]
  %v178 = vld [vmem:[%s2 + $0x8] sm:$0xff]
  %v179 = vld [vmem:[%s2 + $0x10] sm:$0xff]
  %v180 = vld [vmem:[%s2 + $0x18] sm:$0xff]
  %v181 = vld [vmem:[%s2 + $0x20] sm:$0xff]
  %v182 = vld [vmem:[%s2 + $0x28] sm:$0xff]
  %v183 = vld [vmem:[%s2 + $0x30] sm:$0xff]
  %v184 = vld [vmem:[%s2 + $0x38] sm:$0xff]
  %v185 = vperm.slane %v25, 1
  %vm186 = vcmask 523264
  %v188 = vsel %vm186, %v161, 0
  %v191 = vsel %vm186, %v162, 0
  %v194 = vsel %vm186, %v163, 0
  %v197 = vsel %vm186, %v164, 0
  %v200 = vsel %vm186, %v165, 0
  %v203 = vsel %vm186, %v166, 0
  %v206 = vsel %vm186, %v167, 0
  %v209 = vsel %vm186, %v168, 0
  %v212 = vsel %vm186, %v169, 0
  %v215 = vsel %vm186, %v170, 0
  %v218 = vsel %vm186, %v171, 0
  %v221 = vsel %vm186, %v172, 0
  %v224 = vsel %vm186, %v173, 0
  %v227 = vsel %vm186, %v174, 0
  %v230 = vsel %vm186, %v175, 0
  %v233 = vsel %vm186, %v176, 0
  %235 = vmatpush.msra.mxu0 0.0
  %236 = vmatpush.msra.mxu0 0.0
  %237 = vmatpush.msra.mxu0 0.0
  %238 = vmatpush.msra.mxu0 0.0
  %239 = vmatpush.msra.mxu0 0.0
  %240 = vmatpush.msra.mxu0 0.0
  %241 = vmatpush.msra.mxu0 0.0
  %242 = vmatpush.msra.mxu0 0.0
  %243 = vmatpush.msra.mxu0 %v184
  %244 = vmatpush.msra.mxu0 %v183
  %245 = vmatpush.msra.mxu0 %v182
  %246 = vmatpush.msra.mxu0 %v181
  %247 = vmatpush.msra.mxu0 %v180
  %248 = vmatpush.msra.mxu0 %v179
  %249 = vmatpush.msra.mxu0 %v178
  %250 = vmatpush.msra.mxu0 %v177
  %251 = vmatmul.f32.gmra.mxu0 %v188
  %v252 = vpop.f32.mrf.mxu0
  %v253 = vadd.f32 %v185, %v252
  %254 = vmatmul.f32.gmra.mxu0 %v191
  %v255 = vpop.f32.mrf.mxu0
  %v256 = vadd.f32 %v185, %v255
  %257 = vmatmul.f32.gmra.mxu0 %v194
  %v258 = vpop.f32.mrf.mxu0
  %v259 = vadd.f32 %v185, %v258
  %260 = vmatmul.f32.gmra.mxu0 %v197
  %v261 = vpop.f32.mrf.mxu0
  %v262 = vadd.f32 %v185, %v261
  %263 = vmatmul.f32.gmra.mxu0 %v200
  %v264 = vpop.f32.mrf.mxu0
  %v265 = vadd.f32 %v185, %v264
  %266 = vmatmul.f32.gmra.mxu0 %v203
  %v267 = vpop.f32.mrf.mxu0
  %v268 = vadd.f32 %v185, %v267
  %269 = vmatmul.f32.gmra.mxu0 %v206
  %v270 = vpop.f32.mrf.mxu0
  %v271 = vadd.f32 %v185, %v270
  %272 = vmatmul.f32.gmra.mxu0 %v209
  %v273 = vpop.f32.mrf.mxu0
  %v274 = vadd.f32 %v185, %v273
  %275 = vmatmul.f32.gmra.mxu0 %v212
  %v276 = vpop.f32.mrf.mxu0
  %v277 = vadd.f32 %v185, %v276
  %278 = vmatmul.f32.gmra.mxu0 %v215
  %v279 = vpop.f32.mrf.mxu0
  %v280 = vadd.f32 %v185, %v279
  %281 = vmatmul.f32.gmra.mxu0 %v218
  %v282 = vpop.f32.mrf.mxu0
  %v283 = vadd.f32 %v185, %v282
  %284 = vmatmul.f32.gmra.mxu0 %v221
  %v285 = vpop.f32.mrf.mxu0
  %v286 = vadd.f32 %v185, %v285
  %287 = vmatmul.f32.gmra.mxu0 %v224
  %v288 = vpop.f32.mrf.mxu0
  %v289 = vadd.f32 %v185, %v288
  %290 = vmatmul.f32.gmra.mxu0 %v227
  %v291 = vpop.f32.mrf.mxu0
  %v292 = vadd.f32 %v185, %v291
  %293 = vmatmul.f32.gmra.mxu0 %v230
  %v294 = vpop.f32.mrf.mxu0
  %v295 = vadd.f32 %v185, %v294
  %296 = vmatmul.f32.gmra.mxu0 %v233
  %v297 = vpop.f32.mrf.mxu0
  %v298 = vadd.f32 %v185, %v297
  %299 = vdwg.mxu0
  %v300 = vmax.f32 %v253, 0.0
  %v301 = vmax.f32 %v256, 0.0
  %v302 = vmax.f32 %v259, 0.0
  %v303 = vmax.f32 %v262, 0.0
  %v304 = vmax.f32 %v265, 0.0
  %v305 = vmax.f32 %v268, 0.0
  %v306 = vmax.f32 %v271, 0.0
  %v307 = vmax.f32 %v274, 0.0
  %v308 = vmax.f32 %v277, 0.0
  %v309 = vmax.f32 %v280, 0.0
  %v310 = vmax.f32 %v283, 0.0
  %v311 = vmax.f32 %v286, 0.0
  %v312 = vmax.f32 %v289, 0.0
  %v313 = vmax.f32 %v292, 0.0
  %v314 = vmax.f32 %v295, 0.0
  %v315 = vmax.f32 %v298, 0.0
  %s316 = scalar_lea.vmem %s2, 64
  %v317 = vld [vmem:[%s316] sm:$0xff]
  %v318 = vld [vmem:[%s316 + $0x8] sm:$0xff]
  %v319 = vld [vmem:[%s316 + $0x10] sm:$0xff]
  %v320 = vld [vmem:[%s316 + $0x18] sm:$0xff]
  %v321 = vld [vmem:[%s316 + $0x20] sm:$0xff]
  %v322 = vld [vmem:[%s316 + $0x28] sm:$0xff]
  %v323 = vld [vmem:[%s316 + $0x30] sm:$0xff]
  %v324 = vld [vmem:[%s316 + $0x38] sm:$0xff]
  %v325 = vperm.slane %v25, 2
  %v327 = vsel %vm186, %v300, 0
  %v330 = vsel %vm186, %v301, 0
  %v333 = vsel %vm186, %v302, 0
  %v336 = vsel %vm186, %v303, 0
  %v339 = vsel %vm186, %v304, 0
  %v342 = vsel %vm186, %v305, 0
  %v345 = vsel %vm186, %v306, 0
  %v348 = vsel %vm186, %v307, 0
  %v351 = vsel %vm186, %v308, 0
  %v354 = vsel %vm186, %v309, 0
  %v357 = vsel %vm186, %v310, 0
  %v360 = vsel %vm186, %v311, 0
  %v363 = vsel %vm186, %v312, 0
  %v366 = vsel %vm186, %v313, 0
  %v369 = vsel %vm186, %v314, 0
  %v372 = vsel %vm186, %v315, 0
  %374 = vmatpush.msra.mxu0 0.0
  %375 = vmatpush.msra.mxu0 0.0
  %376 = vmatpush.msra.mxu0 0.0
  %377 = vmatpush.msra.mxu0 0.0
  %378 = vmatpush.msra.mxu0 0.0
  %379 = vmatpush.msra.mxu0 0.0
  %380 = vmatpush.msra.mxu0 0.0
  %381 = vmatpush.msra.mxu0 0.0
  %382 = vmatpush.msra.mxu0 %v324
  %383 = vmatpush.msra.mxu0 %v323
  %384 = vmatpush.msra.mxu0 %v322
  %385 = vmatpush.msra.mxu0 %v321
  %386 = vmatpush.msra.mxu0 %v320
  %387 = vmatpush.msra.mxu0 %v319
  %388 = vmatpush.msra.mxu0 %v318
  %389 = vmatpush.msra.mxu0 %v317
  %390 = vmatmul.f32.gmra.mxu0 %v327
  %v391 = vpop.f32.mrf.mxu0
  %v392 = vadd.f32 %v325, %v391
  %393 = vmatmul.f32.gmra.mxu0 %v330
  %v394 = vpop.f32.mrf.mxu0
  %v395 = vadd.f32 %v325, %v394
  %396 = vmatmul.f32.gmra.mxu0 %v333
  %v397 = vpop.f32.mrf.mxu0
  %v398 = vadd.f32 %v325, %v397
  %399 = vmatmul.f32.gmra.mxu0 %v336
  %v400 = vpop.f32.mrf.mxu0
  %v401 = vadd.f32 %v325, %v400
  %402 = vmatmul.f32.gmra.mxu0 %v339
  %v403 = vpop.f32.mrf.mxu0
  %v404 = vadd.f32 %v325, %v403
  %405 = vmatmul.f32.gmra.mxu0 %v342
  %v406 = vpop.f32.mrf.mxu0
  %v407 = vadd.f32 %v325, %v406
  %408 = vmatmul.f32.gmra.mxu0 %v345
  %v409 = vpop.f32.mrf.mxu0
  %v410 = vadd.f32 %v325, %v409
  %411 = vmatmul.f32.gmra.mxu0 %v348
  %v412 = vpop.f32.mrf.mxu0
  %v413 = vadd.f32 %v325, %v412
  %414 = vmatmul.f32.gmra.mxu0 %v351
  %v415 = vpop.f32.mrf.mxu0
  %v416 = vadd.f32 %v325, %v415
  %417 = vmatmul.f32.gmra.mxu0 %v354
  %v418 = vpop.f32.mrf.mxu0
  %v419 = vadd.f32 %v325, %v418
  %420 = vmatmul.f32.gmra.mxu0 %v357
  %v421 = vpop.f32.mrf.mxu0
  %v422 = vadd.f32 %v325, %v421
  %423 = vmatmul.f32.gmra.mxu0 %v360
  %v424 = vpop.f32.mrf.mxu0
  %v425 = vadd.f32 %v325, %v424
  %426 = vmatmul.f32.gmra.mxu0 %v363
  %v427 = vpop.f32.mrf.mxu0
  %v428 = vadd.f32 %v325, %v427
  %429 = vmatmul.f32.gmra.mxu0 %v366
  %v430 = vpop.f32.mrf.mxu0
  %v431 = vadd.f32 %v325, %v430
  %432 = vmatmul.f32.gmra.mxu0 %v369
  %v433 = vpop.f32.mrf.mxu0
  %v434 = vadd.f32 %v325, %v433
  %435 = vmatmul.f32.gmra.mxu0 %v372
  %v436 = vpop.f32.mrf.mxu0
  %v437 = vadd.f32 %v325, %v436
  %438 = vdwg.mxu0
  %v439 = vmax.f32 %v392, 0.0
  %v440 = vmax.f32 %v395, 0.0
  %v441 = vmax.f32 %v398, 0.0
  %v442 = vmax.f32 %v401, 0.0
  %v443 = vmax.f32 %v404, 0.0
  %v444 = vmax.f32 %v407, 0.0
  %v445 = vmax.f32 %v410, 0.0
  %v446 = vmax.f32 %v413, 0.0
  %v447 = vmax.f32 %v416, 0.0
  %v448 = vmax.f32 %v419, 0.0
  %v449 = vmax.f32 %v422, 0.0
  %v450 = vmax.f32 %v425, 0.0
  %v451 = vmax.f32 %v428, 0.0
  %v452 = vmax.f32 %v431, 0.0
  %v453 = vmax.f32 %v434, 0.0
  %v454 = vmax.f32 %v437, 0.0
  %s455 = scalar_lea.vmem %s2, 128
  %v456 = vld [vmem:[%s455] sm:$0xff]
  %v457 = vld [vmem:[%s455 + $0x8] sm:$0xff]
  %v458 = vld [vmem:[%s455 + $0x10] sm:$0xff]
  %v459 = vld [vmem:[%s455 + $0x18] sm:$0xff]
  %v460 = vld [vmem:[%s455 + $0x20] sm:$0xff]
  %v461 = vld [vmem:[%s455 + $0x28] sm:$0xff]
  %v462 = vld [vmem:[%s455 + $0x30] sm:$0xff]
  %v463 = vld [vmem:[%s455 + $0x38] sm:$0xff]
  %v464 = vperm.slane %v25, 3
  %v466 = vsel %vm186, %v439, 0
  %v469 = vsel %vm186, %v440, 0
  %v472 = vsel %vm186, %v441, 0
  %v475 = vsel %vm186, %v442, 0
  %v478 = vsel %vm186, %v443, 0
  %v481 = vsel %vm186, %v444, 0
  %v484 = vsel %vm186, %v445, 0
  %v487 = vsel %vm186, %v446, 0
  %v490 = vsel %vm186, %v447, 0
  %v493 = vsel %vm186, %v448, 0
  %v496 = vsel %vm186, %v449, 0
  %v499 = vsel %vm186, %v450, 0
  %v502 = vsel %vm186, %v451, 0
  %v505 = vsel %vm186, %v452, 0
  %v508 = vsel %vm186, %v453, 0
  %v511 = vsel %vm186, %v454, 0
  %513 = vmatpush.msra.mxu0 0.0
  %514 = vmatpush.msra.mxu0 0.0
  %515 = vmatpush.msra.mxu0 0.0
  %516 = vmatpush.msra.mxu0 0.0
  %517 = vmatpush.msra.mxu0 0.0
  %518 = vmatpush.msra.mxu0 0.0
  %519 = vmatpush.msra.mxu0 0.0
  %520 = vmatpush.msra.mxu0 0.0
  %521 = vmatpush.msra.mxu0 %v463
  %522 = vmatpush.msra.mxu0 %v462
  %523 = vmatpush.msra.mxu0 %v461
  %524 = vmatpush.msra.mxu0 %v460
  %525 = vmatpush.msra.mxu0 %v459
  %526 = vmatpush.msra.mxu0 %v458
  %527 = vmatpush.msra.mxu0 %v457
  %528 = vmatpush.msra.mxu0 %v456
  %529 = vmatmul.f32.gmra.mxu0 %v466
  %v530 = vpop.f32.mrf.mxu0
  %v531 = vadd.f32 %v464, %v530
  %532 = vmatmul.f32.gmra.mxu0 %v469
  %v533 = vpop.f32.mrf.mxu0
  %v534 = vadd.f32 %v464, %v533
  %535 = vmatmul.f32.gmra.mxu0 %v472
  %v536 = vpop.f32.mrf.mxu0
  %v537 = vadd.f32 %v464, %v536
  %538 = vmatmul.f32.gmra.mxu0 %v475
  %v539 = vpop.f32.mrf.mxu0
  %v540 = vadd.f32 %v464, %v539
  %541 = vmatmul.f32.gmra.mxu0 %v478
  %v542 = vpop.f32.mrf.mxu0
  %v543 = vadd.f32 %v464, %v542
  %544 = vmatmul.f32.gmra.mxu0 %v481
  %v545 = vpop.f32.mrf.mxu0
  %v546 = vadd.f32 %v464, %v545
  %547 = vmatmul.f32.gmra.mxu0 %v484
  %v548 = vpop.f32.mrf.mxu0
  %v549 = vadd.f32 %v464, %v548
  %550 = vmatmul.f32.gmra.mxu0 %v487
  %v551 = vpop.f32.mrf.mxu0
  %v552 = vadd.f32 %v464, %v551
  %553 = vmatmul.f32.gmra.mxu0 %v490
  %v554 = vpop.f32.mrf.mxu0
  %v555 = vadd.f32 %v464, %v554
  %556 = vmatmul.f32.gmra.mxu0 %v493
  %v557 = vpop.f32.mrf.mxu0
  %v558 = vadd.f32 %v464, %v557
  %559 = vmatmul.f32.gmra.mxu0 %v496
  %v560 = vpop.f32.mrf.mxu0
  %v561 = vadd.f32 %v464, %v560
  %562 = vmatmul.f32.gmra.mxu0 %v499
  %v563 = vpop.f32.mrf.mxu0
  %v564 = vadd.f32 %v464, %v563
  %565 = vmatmul.f32.gmra.mxu0 %v502
  %v566 = vpop.f32.mrf.mxu0
  %v567 = vadd.f32 %v464, %v566
  %568 = vmatmul.f32.gmra.mxu0 %v505
  %v569 = vpop.f32.mrf.mxu0
  %v570 = vadd.f32 %v464, %v569
  %571 = vmatmul.f32.gmra.mxu0 %v508
  %v572 = vpop.f32.mrf.mxu0
  %v573 = vadd.f32 %v464, %v572
  %574 = vmatmul.f32.gmra.mxu0 %v511
  %v575 = vpop.f32.mrf.mxu0
  %v576 = vadd.f32 %v464, %v575
  %577 = vdwg.mxu0
  %v578 = vmax.f32 %v531, 0.0
  %v579 = vmax.f32 %v534, 0.0
  %v580 = vmax.f32 %v537, 0.0
  %v581 = vmax.f32 %v540, 0.0
  %v582 = vmax.f32 %v543, 0.0
  %v583 = vmax.f32 %v546, 0.0
  %v584 = vmax.f32 %v549, 0.0
  %v585 = vmax.f32 %v552, 0.0
  %v586 = vmax.f32 %v555, 0.0
  %v587 = vmax.f32 %v558, 0.0
  %v588 = vmax.f32 %v561, 0.0
  %v589 = vmax.f32 %v564, 0.0
  %v590 = vmax.f32 %v567, 0.0
  %v591 = vmax.f32 %v570, 0.0
  %v592 = vmax.f32 %v573, 0.0
  %v593 = vmax.f32 %v576, 0.0
  %v594 = vld [vmem:[%s4] sm:$0x1]
  %v596 = vperm.slane %v594, 0
  %v598 = vmul.f32 %v578, %v596
  %v599 = vmul.f32 %v579, %v596
  %v600 = vmul.f32 %v580, %v596
  %v601 = vmul.f32 %v581, %v596
  %v602 = vmul.f32 %v582, %v596
  %v603 = vmul.f32 %v583, %v596
  %v604 = vmul.f32 %v584, %v596
  %v605 = vmul.f32 %v585, %v596
  %v606 = vmul.f32 %v586, %v596
  %v607 = vmul.f32 %v587, %v596
  %v608 = vmul.f32 %v588, %v596
  %v609 = vmul.f32 %v589, %v596
  %v610 = vmul.f32 %v590, %v596
  %v611 = vmul.f32 %v591, %v596
  %v612 = vmul.f32 %v592, %v596
  %v613 = vmul.f32 %v593, %v596
  %v614 = vsel %vm186, %v598, 0.0
  %615 = vadd.xlane.f32.xlu0 %v614
  %v616 = vpop.xlane.xlu0 %615
  %v617 = vsel %vm186, %v599, 0.0
  %618 = vadd.xlane.f32.xlu0 %v617
  %v619 = vpop.xlane.xlu0 %618
  %v620 = vsel %vm186, %v600, 0.0
  %621 = vadd.xlane.f32.xlu0 %v620
  %v622 = vpop.xlane.xlu0 %621
  %v623 = vsel %vm186, %v601, 0.0
  %624 = vadd.xlane.f32.xlu0 %v623
  %v625 = vpop.xlane.xlu0 %624
  %v626 = vsel %vm186, %v602, 0.0
  %627 = vadd.xlane.f32.xlu0 %v626
  %v628 = vpop.xlane.xlu0 %627
  %v629 = vsel %vm186, %v603, 0.0
  %630 = vadd.xlane.f32.xlu0 %v629
  %v631 = vpop.xlane.xlu0 %630
  %v632 = vsel %vm186, %v604, 0.0
  %633 = vadd.xlane.f32.xlu0 %v632
  %v634 = vpop.xlane.xlu0 %633
  %v635 = vsel %vm186, %v605, 0.0
  %636 = vadd.xlane.f32.xlu0 %v635
  %v637 = vpop.xlane.xlu0 %636
  %v638 = vsel %vm186, %v606, 0.0
  %639 = vadd.xlane.f32.xlu0 %v638
  %v640 = vpop.xlane.xlu0 %639
  %v641 = vsel %vm186, %v607, 0.0
  %642 = vadd.xlane.f32.xlu0 %v641
  %v643 = vpop.xlane.xlu0 %642
  %v644 = vsel %vm186, %v608, 0.0
  %645 = vadd.xlane.f32.xlu0 %v644
  %v646 = vpop.xlane.xlu0 %645
  %v647 = vsel %vm186, %v609, 0.0
  %648 = vadd.xlane.f32.xlu0 %v647
  %v649 = vpop.xlane.xlu0 %648
  %v650 = vsel %vm186, %v610, 0.0
  %651 = vadd.xlane.f32.xlu0 %v650
  %v652 = vpop.xlane.xlu0 %651
  %v653 = vsel %vm186, %v611, 0.0
  %654 = vadd.xlane.f32.xlu0 %v653
  %v655 = vpop.xlane.xlu0 %654
  %v656 = vsel %vm186, %v612, 0.0
  %657 = vadd.xlane.f32.xlu0 %v656
  %v658 = vpop.xlane.xlu0 %657
  %v659 = vsel %vm186, %v613, 0.0
  %660 = vadd.xlane.f32.xlu0 %v659
  %v661 = vpop.xlane.xlu0 %660
  %v662 = vld [vmem:[#allocation2] sm:$0x1]
  %s663 = vtos %v662
  %v664 = vstv %s663
  %v665 = vadd.f32 %v616, %v664
  %v666 = vadd.f32 %v619, %v664
  %v667 = vadd.f32 %v622, %v664
  %v668 = vadd.f32 %v625, %v664
  %v669 = vadd.f32 %v628, %v664
  %v670 = vadd.f32 %v631, %v664
  %v671 = vadd.f32 %v634, %v664
  %v672 = vadd.f32 %v637, %v664
  %v673 = vadd.f32 %v640, %v664
  %v674 = vadd.f32 %v643, %v664
  %v675 = vadd.f32 %v646, %v664
  %v676 = vadd.f32 %v649, %v664
  %v677 = vadd.f32 %v652, %v664
  %v678 = vadd.f32 %v655, %v664
  %v679 = vadd.f32 %v658, %v664
  %v680 = vadd.f32 %v661, %v664
  %v697 = vlaneseq
  %v698 = vand.u32 %v697, 127
  %v699 = vperm.slane %v665, %v698
  %v700 = vadd.s32 %v698, 4294967288
  %v701 = vperm.slane %v666, %v700
  %vm702 = vcmask 130112
  %v703 = vsel %vm702, %v701, %v699
  %v704 = vadd.s32 %v698, 4294967280
  %v705 = vperm.slane %v667, %v704
  %vm706 = vcmask 195712
  %v707 = vsel %vm706, %v705, %v703
  %v708 = vadd.s32 %v698, 4294967272
  %v709 = vperm.slane %v668, %v708
  %vm710 = vcmask 261312
  %v711 = vsel %vm710, %v709, %v707
  %v712 = vadd.s32 %v698, 4294967264
  %v713 = vperm.slane %v669, %v712
  %vm714 = vcmask 326912
  %v715 = vsel %vm714, %v713, %v711
  %v716 = vadd.s32 %v698, 4294967256
  %v717 = vperm.slane %v670, %v716
  %vm718 = vcmask 392512
  %v719 = vsel %vm718, %v717, %v715
  %v720 = vadd.s32 %v698, 4294967248
  %v721 = vperm.slane %v671, %v720
  %vm722 = vcmask 458112
  %v723 = vsel %vm722, %v721, %v719
  %v724 = vadd.s32 %v698, 4294967240
  %v725 = vperm.slane %v672, %v724
  %vm726 = vcmask 523712
  %v727 = vsel %vm726, %v725, %v723
  %v728 = vadd.s32 %v698, 4294967232
  %v729 = vperm.slane %v673, %v728
  %vm730 = vcmask 589312
  %v731 = vsel %vm730, %v729, %v727
  %v732 = vadd.s32 %v698, 4294967224
  %v733 = vperm.slane %v674, %v732
  %vm734 = vcmask 654912
  %v735 = vsel %vm734, %v733, %v731
  %v736 = vadd.s32 %v698, 4294967216
  %v737 = vperm.slane %v675, %v736
  %vm738 = vcmask 720512
  %v739 = vsel %vm738, %v737, %v735
  %v740 = vadd.s32 %v698, 4294967208
  %v741 = vperm.slane %v676, %v740
  %vm742 = vcmask 786112
  %v743 = vsel %vm742, %v741, %v739
  %v744 = vadd.s32 %v698, 4294967200
  %v745 = vperm.slane %v677, %v744
  %vm746 = vcmask 851712
  %v747 = vsel %vm746, %v745, %v743
  %v748 = vadd.s32 %v698, 4294967192
  %v749 = vperm.slane %v678, %v748
  %vm750 = vcmask 917312
  %v751 = vsel %vm750, %v749, %v747
  %v752 = vadd.s32 %v698, 4294967184
  %v753 = vperm.slane %v679, %v752
  %vm754 = vcmask 982912
  %v755 = vsel %vm754, %v753, %v751
  %v756 = vadd.s32 %v698, 4294967176
  %v757 = vperm.slane %v680, %v756
  %vm758 = vcmask 1048512
  %v759 = vsel %vm758, %v757, %v755
  %761 = vst [vmem:[%s6] sm:$0x1] %v759
  // Predicated region
  $region26: #{centralized_q_forward.1} parent=0 // pred_check
    _
  $region27: #{centralized_q_forward.1} parent=0 // pred_check_branch
    %763 = sbr.rel (0) target = $region29
  $region28: #{centralized_q_forward.1} parent=0 // pred_region
    _
  $region29: #{centralized_q_forward.1} parent=0 // pred_fallthru
    _
  // Predicated region
  $region30: #{centralized_q_forward.1} parent=0 // pred_check
    _
  $region31: #{centralized_q_forward.1} parent=0 // pred_check_branch
    %765 = sbr.rel (0) target = $region33
  $region32: #{centralized_q_forward.1} parent=0 // pred_region
    _
  $region33: #{centralized_q_forward.1} parent=0 // pred_fallthru
    _

</llo_original>
